<compile_context>
chip_gen: v7x
topology: tpu7x:2x2x1
jax: 0.10.0
libtpu: 0.0.40
codegen_flags: <defaults>
</compile_context>

<pallas_src>
import functools

import jax
import jax.numpy as jnp
from jax.experimental import pallas as pl
from jax.experimental.pallas import tpu as pltpu


# ---------------------------------------------------------------------------
# Fused Pallas kernel: relation logits + sigmoid + (bmm ∘ resize-1x1 conv)
# ---------------------------------------------------------------------------

def _cp_fused_kernel(xagg_ref, xorig_ref, wall_ref, b_ref, a_ref, wx_ref,
                     logits_ref, out_ref, acc_ref):
    """Grid = (N, P-tile, RQ-chunk); RQ-chunk is the innermost reduction axis.

    Per step (channel-major, P on lanes, all matmul inputs bf16 / f32 acc):
        logits_chunk = W_chunk @ x_agg + b_chunk          (RQC, TP)
        acc         += A_chunk @ sigmoid(logits_chunk)    (C,   TP)
    with acc initialised to W_x @ x at chunk 0 and flushed to out_ref at the
    last chunk.  A_n folds bmm(sigmoid, mega_context) with the resize 1x1x1
    conv: A_n[:, r*Q+q] = resize_w_rel[:, r, :] @ mega_n[:, q].
    """
    rq_idx = pl.program_id(2)
    n_rq = pl.num_programs(2)

    xa = xagg_ref[0]              # (C, TP)   bf16
    w_chunk = wall_ref[...]       # (RQC, C)  bf16
    b_chunk = b_ref[...]          # (RQC, 1)  f32
    a_chunk = a_ref[0]            # (C, RQC)  bf16

    # Relation logits for this RQ chunk in one MXU pass (K = C), f32 acc.
    logits = jnp.dot(w_chunk, xa, preferred_element_type=jnp.float32) + b_chunk
    logits_bf = logits.astype(jnp.bfloat16)
    logits_ref[0] = logits_bf                       # bf16 HBM write (dominant)

    @pl.when(rq_idx == 0)
    def _():  # fold the x-part of the resize 1x1x1 conv into the init
        acc_ref[...] = jnp.dot(wx_ref[...], xorig_ref[0],
                               preferred_element_type=jnp.float32)

    # Sigmoid on the EUP (bf16 native on v6e/v7x, legalized on v5e), then the
    # fused relation+resize matmul chunk (K = RQC) accumulated in f32.
    prior = jax.nn.sigmoid(logits_bf)
    acc_ref[...] += jnp.dot(a_chunk, prior, preferred_element_type=jnp.float32)

    @pl.when(rq_idx == n_rq - 1)
    def _():
        out_ref[0] = acc_ref[...].astype(out_ref.dtype)


# ---------------------------------------------------------------------------
# Chip-aware VMEM policy and tile selection
# ---------------------------------------------------------------------------

def _round_up(x, m):
    return ((x + m - 1) // m) * m


def _pad_axis(a, axis, target):
    pad = target - a.shape[axis]
    if pad <= 0:
        return a
    widths = [(0, 0)] * a.ndim
    widths[axis] = (0, pad)
    return jnp.pad(a, widths)


def _vmem_policy():
    """(tile working-set budget, explicit scoped-VMEM limit) in bytes."""
    try:
        cap = int(pltpu.get_tpu_info().vmem_capacity_bytes)
    except Exception:
        cap = 64 * 1024 * 1024          # conservative fallback (v7x per-core)
    limit = min(int(cap * 0.8), 96 * 1024 * 1024)   # v5e/v6e ~96 MiB, v7x ~51 MiB
    budget = int(limit * 0.7)                       # headroom for mosaic scratch
    return budget, limit


def _pick_tiles(P, C, RQ, budget, *, tp=None, rq_chunk=None, n_batch=1,
                max_tp=4096):
    """Pick (TP, RQC), both multiples of 128, whose working set fits `budget`."""
    p_full = _round_up(max(P, 1), 128)
    rq_full = _round_up(max(RQ, 1), 128)

    def footprint(t, r):
        bf, f4 = 2, 4
        return (2 * (2 * C * t * bf)                              # x_agg + x tiles (dbuf)
                + 2 * (r * C * bf + C * r * bf + C * C * bf
                       + r * 128 * f4)                            # streamed weights + bias (dbuf)
                + 2 * (r * t * bf + C * t * f4)                   # logits chunk + x_res (dbuf)
                + C * t * f4                                      # f32 accumulator scratch
                + r * t * (f4 + bf))                              # live f32 logits + bf16 prior

    rqc = _round_up(min(rq_chunk or 1024, rq_full), 128)

    if tp is not None:
        tp = min(_round_up(tp, 128), p_full)
        while footprint(tp, rqc) > budget and rqc > 128 and rq_chunk is None:
            rqc //= 2
        return tp, rqc

    while True:
        upper = min(max_tp, p_full)
        cands = list(range(128, upper + 1, 128))
        fitting = [t for t in cands if footprint(t, rqc) <= budget]
        if fitting:
            break
        if rqc > 128 and rq_chunk is None:
            rqc //= 2
        else:
            fitting = [128]
            break

    tp = fitting[-1]
    # v7x (2 TCs): prefer an even total step count so both cores stay busy.
    n_steps = lambda t: n_batch * (-(-p_full // t))
    if n_steps(tp) % 2 == 1:
        even = [t for t in fitting if n_steps(t) % 2 == 0 and 2 * t >= tp]
        if even:
            tp = even[-1]
    return tp, rqc


# ---------------------------------------------------------------------------
# Pallas wrapper
# ---------------------------------------------------------------------------

def cp_fused(x_agg_cm, x_cm, w_all, b_all, a_ctx, w_x, *, tp=None,
             rq_chunk=None):
    """x_agg_cm, x_cm: (N, C, P); w_all: (R*Q, C); b_all: (R*Q, 1);
    a_ctx: (N, C, R*Q); w_x: (C, C).
    Returns logits_flat (N, R*Q, P) [bf16] and x_res_cm (N, C, P) [f32]."""
    N, C, P = x_agg_cm.shape
    RQ = w_all.shape[0]
    budget, vmem_limit = _vmem_policy()
    tp, rqc = _pick_tiles(P, C, RQ, budget, tp=tp, rq_chunk=rq_chunk,
                          n_batch=N)

    P_pad = _round_up(P, tp)
    RQ_pad = _round_up(RQ, rqc)
    n_p, n_rq = P_pad // tp, RQ_pad // rqc

    bf = jnp.bfloat16
    xa = _pad_axis(x_agg_cm.astype(bf), 2, P_pad)
    xo = _pad_axis(x_cm.astype(bf), 2, P_pad)
    w_all_p = _pad_axis(w_all.astype(bf), 0, RQ_pad)       # zero rows -> logits 0
    b_all_p = _pad_axis(b_all.astype(jnp.float32), 0, RQ_pad)
    a_ctx_p = _pad_axis(a_ctx.astype(bf), 2, RQ_pad)       # zero cols -> no contrib
    w_x_b = w_x.astype(bf)

    flops = 2 * N * P_pad * C * (2 * RQ_pad + C)
    transcendentals = N * RQ_pad * P_pad
    bytes_accessed = (2 * (2 * N * C * P_pad)              # bf16 x_agg + x reads
                      + 2 * N * RQ_pad * P_pad             # bf16 logits write
                      + 4 * N * C * P_pad                  # f32 x_res write
                      + 2 * (RQ_pad * C + N * C * RQ_pad + C * C)
                      + 4 * RQ_pad)

    logits, out = pl.pallas_call(
        _cp_fused_kernel,
        out_shape=(
            jax.ShapeDtypeStruct((N, RQ_pad, P_pad), jnp.bfloat16),
            jax.ShapeDtypeStruct((N, C, P_pad), jnp.float32),
        ),
        grid=(N, n_p, n_rq),
        in_specs=[
            pl.BlockSpec((1, C, tp), lambda n, p, r: (n, 0, p)),     # x_agg tile
            pl.BlockSpec((1, C, tp), lambda n, p, r: (n, 0, p)),     # x tile
            pl.BlockSpec((rqc, C), lambda n, p, r: (r, 0)),          # rel-W chunk
            pl.BlockSpec((rqc, 1), lambda n, p, r: (r, 0)),          # rel-b chunk
            pl.BlockSpec((1, C, rqc), lambda n, p, r: (n, 0, r)),    # A_n chunk
            pl.BlockSpec((C, C), lambda n, p, r: (0, 0)),            # resize W_x
        ],
        out_specs=(
            pl.BlockSpec((1, rqc, tp), lambda n, p, r: (n, r, p)),   # logits chunk
            pl.BlockSpec((1, C, tp), lambda n, p, r: (n, 0, p)),     # resized x
        ),
        scratch_shapes=[pltpu.VMEM((C, tp), jnp.float32)],           # f32 accumulator
        compiler_params=pltpu.CompilerParams(
            dimension_semantics=("parallel", "parallel", "arbitrary"),
            vmem_limit_bytes=int(vmem_limit)),
        cost_estimate=pl.CostEstimate(
            flops=flops, transcendentals=transcendentals,
            bytes_accessed=bytes_accessed),
    )(xa, xo, w_all_p, b_all_p, a_ctx_p, w_x_b)

    return logits[:, :RQ, :P], out[:, :, :P]


# ---------------------------------------------------------------------------
# Plain-JAX glue (dense 3D convs, BN, ASPP, Bottleneck3D/Process)
# ---------------------------------------------------------------------------

def conv3d(x, w, stride=1, padding=0, dilation=1, bias=None):
    """x: NCDHW, w: OIDHW (matches torch.nn.Conv3d)."""
    to3 = lambda v: (v, v, v) if isinstance(v, int) else tuple(v)
    stride, padding, dilation = to3(stride), to3(padding), to3(dilation)
    out = jax.lax.conv_general_dilated(
        x, w, window_strides=stride,
        padding=[(p, p) for p in padding],
        rhs_dilation=dilation,
        dimension_numbers=("NCDHW", "OIDHW", "NCDHW"))
    if bias is not None:
        out = out + bias.reshape(1, -1, 1, 1, 1)
    return out


def bn_eval(x, eps=1e-5):
    # BatchNorm3d in eval mode with default params: gamma=1, beta=0,
    # running_mean=0, running_var=1  -> x / sqrt(1 + eps)
    return x * (1.0 / jnp.sqrt(1.0 + eps))


def aspp_forward(x, aspp_params, dilations=(1, 2, 3)):
    y = None
    for d, pr in zip(dilations, aspp_params):
        t = jax.nn.relu(bn_eval(conv3d(x, pr["w1"], padding=d, dilation=d)))
        t = bn_eval(conv3d(t, pr["w2"], padding=d, dilation=d))
        y = t if y is None else y + t
    return jax.nn.relu(y + x)


def bottleneck3d(x, pr):
    """MonoScene-style Bottleneck3D, stride=1, dilation=(1,1,1), no downsample."""
    out1 = jax.nn.relu(bn_eval(conv3d(x, pr["conv1"])))
    out2 = bn_eval(conv3d(out1, pr["conv2"], padding=(0, 0, 1)))
    out2_relu = jax.nn.relu(out2)
    out3 = bn_eval(conv3d(out2_relu, pr["conv3"], padding=(0, 1, 0))) + out2
    out3_relu = jax.nn.relu(out3)
    out4 = bn_eval(conv3d(out3_relu, pr["conv4"], padding=(1, 0, 0))) + out2 + out3
    out4_relu = jax.nn.relu(out4)
    out5 = bn_eval(conv3d(out4_relu, pr["conv5"]))
    return jax.nn.relu(out5 + x)


# ---------------------------------------------------------------------------
# CPMegaVoxels forward
# ---------------------------------------------------------------------------

def cp_mega_voxels_forward(params, x, size, num_relations=4, tp=None,
                           rq_chunk=None, use_pallas=True):
    N, C = x.shape[:2]
    D, H, W = size
    P = D * H * W
    Cc = 2 * C
    s = 2
    Q = (D // s) * (H // s) * (W // s)
    R = num_relations
    RQ = R * Q
    pad = ((D + 1) % s, (H + 1) % s, (W + 1) % s)

    # ASPP aggregation
    x_agg = aspp_forward(x, params["aspp"])                            # (N,C,D,H,W)

    # mega context: 3x3x3 stride-2 conv, kept channel-major flattened (N,Cc,Q)
    mega = conv3d(x_agg, params["mega_w"], stride=s, padding=pad,
                  bias=params["mega_b"])                               # (N,Cc,D/2,H/2,W/2)
    mega_cm = mega.reshape(N, Cc, Q)                                   # (N,Cc,Q)

    # Channel-major flattened views — no transposes, P stays innermost.
    x_agg_cm = x_agg.reshape(N, C, P)                                  # (N,C,P)
    x_cm = x.reshape(N, C, P)                                          # (N,C,P)

    # Stack the R context-prior 1x1x1 convs into one (R*Q, C) weight.
    w_all = params["cp_w"].reshape(RQ, C)                              # (R*Q,C)
    b_all = params["cp_b"].reshape(RQ, 1)                              # (R*Q,1)

    # Fold the resize 1x1x1 conv: split its weight into the x part (C,C) and
    # the relation part, and pre-contract the latter with mega_context:
    #   A_n[o, r*Q+q] = sum_c resize_w[o, C + r*Cc + c] * mega[n, c, q]
    resize_w = params["resize_w"]                                      # (C, C+R*Cc)
    w_x = resize_w[:, :C]                                              # (C,C)
    w_rel = resize_w[:, C:].reshape(C, R, Cc)                          # (C,R,Cc)
    a_ctx = jnp.einsum("orc,ncq->norq", w_rel, mega_cm,
                       precision=jax.lax.Precision.HIGHEST).reshape(N, C, RQ)

    if use_pallas:
        logits_flat, x_res_cm = cp_fused(x_agg_cm, x_cm, w_all, b_all,
                                         a_ctx, w_x, tp=tp, rq_chunk=rq_chunk)
    else:
        # Unfused pure-JAX reference following the original torch op order
        # (validates the relation/resize fusion and the bf16 kernel numerics).
        hi = jax.lax.Precision.HIGHEST
        logits_flat = jnp.einsum("kc,ncp->nkp", w_all, x_agg_cm,
                                 precision=hi) + b_all[None]
        prior = jax.nn.sigmoid(logits_flat).reshape(N, R, Q, P)
        ctx = jnp.einsum("nrqp,ncq->nrcp", prior, mega_cm, precision=hi)
        ctx = ctx.reshape(N, R * Cc, P)
        cat = jnp.concatenate([x_cm, ctx], axis=1)                     # (N,C+R*Cc,P)
        x_res_cm = jnp.einsum("oc,ncp->nop", resize_w, cat, precision=hi)

    # p_logits already in torch's (N, R, Q, P) order — pure dim-split reshape.
    p_logits = logits_flat.reshape(N, R, Q, P)
    x_res = x_res_cm.astype(jnp.float32).reshape(N, C, D, H, W)

    x3d = bottleneck3d(x_res, params["proc"])
    return x3d, p_logits


# ---------------------------------------------------------------------------
# Deterministic parameter init (synthetic; mirrors the module's __init__ shapes)
# ---------------------------------------------------------------------------

def init_params(key, channels, size, num_relations):
    C = channels
    Cc = 2 * C
    Q = (size[0] // 2) * (size[1] // 2) * (size[2] // 2)
    keys = list(jax.random.split(key, 32))
    kit = iter(keys)

    def w(shape, scale=0.1):
        return (scale * jax.random.normal(next(kit), shape)).astype(jnp.float32)

    p_ch = max(C // 4, 1)
    params = {
        # ASPP(channels, (1,2,3)): two 3x3x3 convs (bias=False) per dilation
        "aspp": [{"w1": w((C, C, 3, 3, 3)), "w2": w((C, C, 3, 3, 3))} for _ in (1, 2, 3)],
        # mega_context: Conv3d(C, 2C, k=3, s=2, pad)
        "mega_w": w((Cc, C, 3, 3, 3)),
        "mega_b": w((Cc,)),
        # context_prior_logits: R x Conv3d(C, Q, k=1)  (torch weight layout (O,I))
        "cp_w": w((num_relations, Q, C)),
        "cp_b": w((num_relations, Q)),
        # resize[0]: Conv3d(2C*R + C, C, k=1, bias=False)
        "resize_w": w((C, Cc * num_relations + C)),
        # resize[1]: Process(C, dilations=(1,)) -> one Bottleneck3D(C, C//4)
        "proc": {
            "conv1": w((p_ch, C, 1, 1, 1)),
            "conv2": w((p_ch, p_ch, 1, 1, 3)),
            "conv3": w((p_ch, p_ch, 1, 3, 1)),
            "conv4": w((p_ch, p_ch, 3, 1, 1)),
            "conv5": w((C, p_ch, 1, 1, 1)),
        },
    }
    return params


if __name__ == "__main__":
    channels = 4
    size = (8, 8, 8)
    num_relations = 4
    batch = 2

    key = jax.random.PRNGKey(0)
    kp, kx = jax.random.split(key)
    params = init_params(kp, channels, size, num_relations)
    x = jax.random.normal(kx, (batch, channels, *size), dtype=jnp.float32)

    # Sanity-check the chip-aware auto-tiler at a realistic MonoScene shape
    # (P = 15*9*15 = 2025 has no multiple-of-128 divisor: the padded path
    # must engage and both tiles stay 128-aligned).  Pure Python, no compile.
    budget, _limit = _vmem_policy()
    auto_tp, auto_rqc = _pick_tiles(15 * 9 * 15, 64, 4 * (7 * 4 * 7), budget,
                                    n_batch=1)
    assert auto_tp % 128 == 0 and auto_rqc % 128 == 0, (auto_tp, auto_rqc)

    # tp=256 / rq_chunk=128 exercises both the P tiling and the RQ reduction
    # axis (grid = (N, P_pad//tp, RQ_pad//rqc) = (2, 2, 2)) at the demo size;
    # leaving them None auto-picks VMEM-budgeted tiles for large scenes.
    fwd = jax.jit(functools.partial(
        cp_mega_voxels_forward, size=size, num_relations=num_relations,
        tp=256, rq_chunk=128))
    x3d, p_logits = fwd(params, x)
    jax.block_until_ready((x3d, p_logits))

    # Unfused pure-JAX f32 reference for numerical validation of the kernel.
    ref_fwd = jax.jit(functools.partial(
        cp_mega_voxels_forward, size=size, num_relations=num_relations,
        use_pallas=False))
    x3d_ref, p_logits_ref = ref_fwd(params, x)
    jax.block_until_ready((x3d_ref, p_logits_ref))

    P = size[0] * size[1] * size[2]
    Q = (size[0] // 2) * (size[1] // 2) * (size[2] // 2)
    assert x3d.shape == (batch, channels, *size), x3d.shape
    assert p_logits.shape == (batch, num_relations, Q, P), p_logits.shape
    assert jnp.all(jnp.isfinite(x3d)) and jnp.all(jnp.isfinite(p_logits))
    assert jnp.allclose(p_logits, p_logits_ref, rtol=2e-2, atol=2e-2)
    assert jnp.allclose(x3d, x3d_ref, rtol=2e-2, atol=2e-2)
    print("KERNEL_OK")
</pallas_src>

<mosaic_0001>
module attributes {stable_mosaic.version = 11 : i64} {
  func.func @_cp_fused_kernel(%arg0: i32, %arg1: i32, %arg2: i32, %arg3: memref<1x4x256xbf16, #tpu.memory_space<vmem>>, %arg4: memref<1x4x256xbf16, #tpu.memory_space<vmem>>, %arg5: memref<128x4xbf16, #tpu.memory_space<vmem>>, %arg6: memref<128x1xf32, #tpu.memory_space<vmem>>, %arg7: memref<1x4x128xbf16, #tpu.memory_space<vmem>>, %arg8: memref<4x4xbf16, #tpu.memory_space<vmem>>, %arg9: memref<1x128x256xbf16, #tpu.memory_space<vmem>>, %arg10: memref<1x4x256xf32, #tpu.memory_space<vmem>>, %arg11: memref<4x256xf32, #tpu.memory_space<vmem>>) attributes {dimension_semantics = [#tpu.dimension_semantics<parallel>, #tpu.dimension_semantics<parallel>, #tpu.dimension_semantics<arbitrary>], iteration_bounds = array<i64: 2, 2, 2>, scalar_prefetch = 0 : i64, scratch_operands = 1 : i64, tpu.core_type = #tpu.core_type<tc>, window_params = [{transform_indices = @transform_0, window_bounds = array<i64: 1, 4, 256>}, {transform_indices = @transform_1, window_bounds = array<i64: 1, 4, 256>}, {transform_indices = @transform_2, window_bounds = array<i64: 128, 4>}, {transform_indices = @transform_3, window_bounds = array<i64: 128, 1>}, {transform_indices = @transform_4, window_bounds = array<i64: 1, 4, 128>}, {pipeline_mode = #tpu.pipeline_mode<synchronous>, transform_indices = @transform_5, window_bounds = array<i64: 4, 4>}, {transform_indices = @transform_6, window_bounds = array<i64: 1, 128, 256>}, {transform_indices = @transform_7, window_bounds = array<i64: 1, 4, 256>}]} {
    %c0 = arith.constant 0 : index
    %c0_0 = arith.constant 0 : index
    %c0_1 = arith.constant 0 : index
    %0 = vector.load %arg3[%c0, %c0_0, %c0_1] : memref<1x4x256xbf16, #tpu.memory_space<vmem>>, vector<1x4x256xbf16>
    %1 = vector.shape_cast %0 : vector<1x4x256xbf16> to vector<4x256xbf16>
    %c0_2 = arith.constant 0 : index
    %c0_3 = arith.constant 0 : index
    %2 = vector.load %arg5[%c0_2, %c0_3] : memref<128x4xbf16, #tpu.memory_space<vmem>>, vector<128x4xbf16>
    %c0_4 = arith.constant 0 : index
    %c0_5 = arith.constant 0 : index
    %3 = vector.load %arg6[%c0_4, %c0_5] : memref<128x1xf32, #tpu.memory_space<vmem>>, vector<128x1xf32>
    %c0_6 = arith.constant 0 : index
    %c0_7 = arith.constant 0 : index
    %c0_8 = arith.constant 0 : index
    %4 = vector.load %arg7[%c0_6, %c0_7, %c0_8] : memref<1x4x128xbf16, #tpu.memory_space<vmem>>, vector<1x4x128xbf16>
    %5 = vector.shape_cast %4 : vector<1x4x128xbf16> to vector<4x128xbf16>
    %cst = arith.constant dense<0.000000e+00> : vector<128x256xf32>
    %6 = tpu.matmul %2, %1, %cst {dimension_numbers = #tpu.dot_dimension_numbers<[1], [0], [0], [1], [0, 0, 1, 1], [], []>} : vector<128x4xbf16>, vector<4x256xbf16>, vector<128x256xf32> -> vector<128x256xf32>
    %7 = vector.broadcast %3 : vector<128x1xf32> to vector<128x256xf32>
    %8 = arith.addf %6, %7 : vector<128x256xf32>
    %9 = arith.truncf %8 : vector<128x256xf32> to vector<128x256xbf16>
    %c0_9 = arith.constant 0 : index
    %c0_10 = arith.constant 0 : index
    %c0_11 = arith.constant 0 : index
    %10 = vector.load %arg9[%c0_9, %c0_10, %c0_11] : memref<1x128x256xbf16, #tpu.memory_space<vmem>>, vector<1x128x256xbf16>
    %11 = vector.shape_cast %10 : vector<1x128x256xbf16> to vector<128x256xbf16>
    %12 = vector.shape_cast %9 : vector<128x256xbf16> to vector<1x128x256xbf16>
    tpu.vector_store %arg9[%c0_9, %c0_10, %c0_11], %12 {strides = array<i32>} : memref<1x128x256xbf16, #tpu.memory_space<vmem>>, vector<1x128x256xbf16>,
    %c0_i32 = arith.constant 0 : i32
    %13 = arith.cmpi eq, %arg2, %c0_i32 : i32
    %14 = arith.extui %13 : i1 to i32
    %c0_i32_12 = arith.constant 0 : i32
    %15 = arith.cmpi ne, %14, %c0_i32_12 : i32
    scf.if %15 {
      %c0_20 = arith.constant 0 : index
      %c0_21 = arith.constant 0 : index
      %28 = vector.load %arg8[%c0_20, %c0_21] : memref<4x4xbf16, #tpu.memory_space<vmem>>, vector<4x4xbf16>
      %c0_22 = arith.constant 0 : index
      %c0_23 = arith.constant 0 : index
      %c0_24 = arith.constant 0 : index
      %29 = vector.load %arg4[%c0_22, %c0_23, %c0_24] : memref<1x4x256xbf16, #tpu.memory_space<vmem>>, vector<1x4x256xbf16>
      %30 = vector.shape_cast %29 : vector<1x4x256xbf16> to vector<4x256xbf16>
      %cst_25 = arith.constant dense<0.000000e+00> : vector<4x256xf32>
      %31 = tpu.matmul %28, %30, %cst_25 {dimension_numbers = #tpu.dot_dimension_numbers<[1], [0], [0], [1], [0, 0, 1, 1], [], []>} : vector<4x4xbf16>, vector<4x256xbf16>, vector<4x256xf32> -> vector<4x256xf32>
      %c0_26 = arith.constant 0 : index
      %c0_27 = arith.constant 0 : index
      %32 = vector.load %arg11[%c0_26, %c0_27] : memref<4x256xf32, #tpu.memory_space<vmem>>, vector<4x256xf32>
      tpu.vector_store %arg11[%c0_26, %c0_27], %31 {strides = array<i32>} : memref<4x256xf32, #tpu.memory_space<vmem>>, vector<4x256xf32>,
    } else {
    }
    %16 = arith.negf %9 : vector<128x256xbf16>
    %17 = math.exp %16 : vector<128x256xbf16>
    %cst_13 = arith.constant 1.000000e+00 : bf16
    %18 = vector.broadcast %cst_13 : bf16 to vector<128x256xbf16>
    %19 = arith.addf %18, %17 : vector<128x256xbf16>
    %20 = arith.divf %18, %19 : vector<128x256xbf16>
    %c0_14 = arith.constant 0 : index
    %c0_15 = arith.constant 0 : index
    %21 = vector.load %arg11[%c0_14, %c0_15] : memref<4x256xf32, #tpu.memory_space<vmem>>, vector<4x256xf32>
    %cst_16 = arith.constant dense<0.000000e+00> : vector<4x256xf32>
    %22 = tpu.matmul %5, %20, %cst_16 {dimension_numbers = #tpu.dot_dimension_numbers<[1], [0], [0], [1], [0, 0, 1, 1], [], []>} : vector<4x128xbf16>, vector<128x256xbf16>, vector<4x256xf32> -> vector<4x256xf32>
    %23 = arith.addf %21, %22 : vector<4x256xf32>
    %c0_17 = arith.constant 0 : index
    %c0_18 = arith.constant 0 : index
    %24 = vector.load %arg11[%c0_17, %c0_18] : memref<4x256xf32, #tpu.memory_space<vmem>>, vector<4x256xf32>
    tpu.vector_store %arg11[%c0_17, %c0_18], %23 {strides = array<i32>} : memref<4x256xf32, #tpu.memory_space<vmem>>, vector<4x256xf32>,
    %c1_i32 = arith.constant 1 : i32
    %25 = arith.cmpi eq, %arg2, %c1_i32 : i32
    %26 = arith.extui %25 : i1 to i32
    %c0_i32_19 = arith.constant 0 : i32
    %27 = arith.cmpi ne, %26, %c0_i32_19 : i32
    scf.if %27 {
      %c0_20 = arith.constant 0 : index
      %c0_21 = arith.constant 0 : index
      %28 = vector.load %arg11[%c0_20, %c0_21] : memref<4x256xf32, #tpu.memory_space<vmem>>, vector<4x256xf32>
      %c0_22 = arith.constant 0 : index
      %c0_23 = arith.constant 0 : index
      %c0_24 = arith.constant 0 : index
      %29 = vector.load %arg10[%c0_22, %c0_23, %c0_24] : memref<1x4x256xf32, #tpu.memory_space<vmem>>, vector<1x4x256xf32>
      %30 = vector.shape_cast %29 : vector<1x4x256xf32> to vector<4x256xf32>
      %31 = vector.shape_cast %28 : vector<4x256xf32> to vector<1x4x256xf32>
      tpu.vector_store %arg10[%c0_22, %c0_23, %c0_24], %31 {strides = array<i32>} : memref<1x4x256xf32, #tpu.memory_space<vmem>>, vector<1x4x256xf32>,
    } else {
    }
    return
  }
  func.func @transform_0(%arg0: i32, %arg1: i32, %arg2: i32) -> (i32, i32, i32) {
    %c0_i32 = arith.constant 0 : i32
    %c0_i32_0 = arith.constant 0 : i32
    return %arg0, %c0_i32, %arg1 : i32, i32, i32
  }
  func.func @transform_1(%arg0: i32, %arg1: i32, %arg2: i32) -> (i32, i32, i32) {
    %c0_i32 = arith.constant 0 : i32
    %c0_i32_0 = arith.constant 0 : i32
    return %arg0, %c0_i32, %arg1 : i32, i32, i32
  }
  func.func @transform_2(%arg0: i32, %arg1: i32, %arg2: i32) -> (i32, i32) {
    %c0_i32 = arith.constant 0 : i32
    %c0_i32_0 = arith.constant 0 : i32
    return %arg2, %c0_i32 : i32, i32
  }
  func.func @transform_3(%arg0: i32, %arg1: i32, %arg2: i32) -> (i32, i32) {
    %c0_i32 = arith.constant 0 : i32
    %c0_i32_0 = arith.constant 0 : i32
    return %arg2, %c0_i32 : i32, i32
  }
  func.func @transform_4(%arg0: i32, %arg1: i32, %arg2: i32) -> (i32, i32, i32) {
    %c0_i32 = arith.constant 0 : i32
    %c0_i32_0 = arith.constant 0 : i32
    return %arg0, %c0_i32, %arg2 : i32, i32, i32
  }
  func.func @transform_5(%arg0: i32, %arg1: i32, %arg2: i32) -> (i32, i32) {
    %c0_i32 = arith.constant 0 : i32
    %c0_i32_0 = arith.constant 0 : i32
    %c0_i32_1 = arith.constant 0 : i32
    return %c0_i32, %c0_i32_0 : i32, i32
  }
  func.func @transform_6(%arg0: i32, %arg1: i32, %arg2: i32) -> (i32, i32, i32) {
    %c0_i32 = arith.constant 0 : i32
    return %arg0, %arg2, %arg1 : i32, i32, i32
  }
  func.func @transform_7(%arg0: i32, %arg1: i32, %arg2: i32) -> (i32, i32, i32) {
    %c0_i32 = arith.constant 0 : i32
    %c0_i32_0 = arith.constant 0 : i32
    return %arg0, %c0_i32, %arg1 : i32, i32, i32
  }
}

</mosaic_0001>

<llo_original>
// kernel: cp_mega_voxels_forward.1
$region0: #{cp_mega_voxels_forward.1}
  #allocation0 [shape = 'u32[]', space=smem, size = 0x4, offset = 0x4, fixed_abs, tag = 'smem constant byte address 0x4 - core index']
  #allocation1 [shape = 'u32[144,128]{1,0:T(1,128)}', space=vmem, size = 0x12000, scoped, tag = 'internal scratch']
  #allocation2 [shape = 'f32[4,256]{1,0:T(4,128)}', space=vmem, size = 0x1000, scoped, tag = 'scratch operand']
  %s0 = inlined_call_operand.vmem [shape: bf16[2,4,512], index: 0, kind: input, shape index: {}]
  %s1 = inlined_call_operand.vmem [shape: bf16[2,4,512], index: 1, kind: input, shape index: {}]
  %s2 = inlined_call_operand.vmem [shape: bf16[256,4], index: 2, kind: input, shape index: {}]
  %s3 = inlined_call_operand.vmem [shape: f32[256,1], index: 3, kind: input, shape index: {}]
  %s4 = inlined_call_operand.vmem [shape: bf16[2,4,256], index: 4, kind: input, shape index: {}]
  %s5 = inlined_call_operand.vmem [shape: bf16[4,4], index: 5, kind: input, shape index: {}]
  %s6 = inlined_call_operand.hbm [shape: bf16[2,256,512], index: 6, kind: output, shape index: {0}]
  %s7 = inlined_call_operand.vmem [shape: f32[2,4,512], index: 7, kind: output, shape index: {1}]
  %8 = xla_tuple %s6, %s7
  %s9 = sld [smem:[#allocation0]]
  $region73: #{cp_mega_voxels_forward.1} parent=0
    _
  %s11 = ssub.s32 1, %s9
  %s12 = scalar_select 0, %s11, %s9
  $region1: #{cp_mega_voxels_forward.1} parent=0
    #allocation3 [shape = 'u8[131072]{0}', space=vmem, size = 0x20000, scoped, tag = 'output window, operand 0']
    #allocation4 [shape = 's32[2]{0}', space=sflag, size = 0x8, scoped, tag = 'scoped memory for cp_mega_voxels_forward.1']
    %13 = vsyncpa [#allocation4], 0
    %s14 = scalar_lea.sflag [#allocation4], 1
    %15 = vsyncpa %s14, 0
    loop: start=0, step=1, limit=10
    $region2: #{cp_mega_voxels_forward.1} parent=1 // loop_pre_header
      _
    $region3: #{cp_mega_voxels_forward.1} parent=1 // loop_header
      %s17 = sphi 0, %s21
      %p18 = scmp.ge.s32.totalorder %s17, 10
      %s24 = sphi 0, %s43
      %s25 = sphi 0, %s39
      %s26 = sphi 0, %s35
      %s27 = sphi 0, %s24
      %s28 = sphi 0, %s25
      %s29 = sphi 0, %s26
      %s30 = sphi 0, %s27
      %s31 = sphi 0, %s28
      %s32 = sphi 0, %s29
      %s48 = sphi 0, %s50
      %s51 = sphi 0, %s48
      %s52 = sphi 0, %s51
      %s68 = sphi 0, %s52
      %s76 = sphi 0, %s78
      %s79 = sphi 0, %s76
      %s80 = sphi 0, %s79
      %s96 = sphi 0, %s80
      %s102 = sphi 0, %s104
      %s105 = sphi 0, %s102
      %s106 = sphi 0, %s105
      %s122 = sphi 0, %s106
      %s128 = sphi 0, %s130
      %s131 = sphi 0, %s128
      %s132 = sphi 0, %s131
      %s148 = sphi 0, %s132
      %s156 = sphi 0, %s158
      %s159 = sphi 0, %s156
      %s160 = sphi 0, %s159
      %s176 = sphi 0, %s160
      %s180 = sphi 0, %s180
      %s182 = sphi 0, %s180
      %s183 = sphi 0, %s182
      %s197 = sphi 0, %s183
      %s207 = sphi 0, %s209
      %s210 = sphi 0, %s207
      %s211 = sphi 0, %s210
      %s227 = sphi 0, %s211
      %s235 = sphi 0, %s237
      %s238 = sphi 0, %s235
      %s239 = sphi 0, %s238
      %s255 = sphi 0, %s239
    $region4: #{cp_mega_voxels_forward.1} parent=1 // loop_header_branch
      %20 = sbr.rel (%p18) target = $region8
    $region5: #{cp_mega_voxels_forward.1} parent=1 // loop_body
      %s22 = ssub.s32 %s17, 1
      %s23 = ssub.s32 %s17, 2
      %s33 = sadd.s32 1, %s26
      %p34 = scmp.ge.s32.totalorder %s33, 2
      %s35 = scalar_select %p34, 0, %s33
      %s36 = sadd.s32 1, %s25
      %s37 = scalar_select %p34, %s36, %s25
      %p38 = scmp.ge.s32.totalorder %s37, 2
      %s39 = scalar_select %p38, 0, %s37
      %s40 = sadd.s32 1, %s24
      %s41 = scalar_select %p38, %s40, %s24
      %p42 = scmp.ge.s32.totalorder %s41, 2
      %s43 = scalar_select %p42, 0, %s41
      %s44 = ssub.s32 %s24, %s43
      %s45 = ssub.s32 %s25, %s39
      %s46 = sor.u32 %s44, %s45
      %p47 = scmp.eq.s32.totalorder %s46, 0
      %s49 = sadd.s32 %s48, 1
      %s50 = scalar_select %p47, %s48, %s49
      %p53 = pneg %p47
      %p54 = scmp.eq.s32.totalorder %s17, 7
      %p55 = por %p53, %p54
      %p56 = scmp.ne.s32.totalorder %s48, %s51
      %p57 = scmp.eq.s32.totalorder %s17, 0
      %p58 = por %p56, %p57
      %p59 = scmp.ne.s32.totalorder %s48, %s51
      %p60 = scmp.eq.s32.totalorder %s22, 7
      %p61 = por %p59, %p60
      %p62 = scmp.ne.s32.totalorder %s51, %s52
      %p63 = scmp.eq.s32.totalorder %s22, 0
      %p64 = por %p62, %p63
      %p65 = scmp.ne.s32.totalorder %s51, %s52
      %p66 = scmp.eq.s32.totalorder %s23, 7
      %p67 = por %p65, %p66
      %p69 = scmp.ne.s32.totalorder %s52, %s68
      %p70 = scmp.eq.s32.totalorder %s23, 0
      %p71 = por %p69, %p70
      %s72 = ssub.s32 %s24, %s43
      %s73 = ssub.s32 %s25, %s39
      %s74 = sor.u32 %s72, %s73
      %p75 = scmp.eq.s32.totalorder %s74, 0
      %s77 = sadd.s32 %s76, 1
      %s78 = scalar_select %p75, %s76, %s77
      %p81 = pneg %p75
      %p82 = scmp.eq.s32.totalorder %s17, 7
      %p83 = por %p81, %p82
      %p84 = scmp.ne.s32.totalorder %s76, %s79
      %p85 = scmp.eq.s32.totalorder %s17, 0
      %p86 = por %p84, %p85
      %p87 = scmp.ne.s32.totalorder %s76, %s79
      %p88 = scmp.eq.s32.totalorder %s22, 7
      %p89 = por %p87, %p88
      %p90 = scmp.ne.s32.totalorder %s79, %s80
      %p91 = scmp.eq.s32.totalorder %s22, 0
      %p92 = por %p90, %p91
      %p93 = scmp.ne.s32.totalorder %s79, %s80
      %p94 = scmp.eq.s32.totalorder %s23, 7
      %p95 = por %p93, %p94
      %p97 = scmp.ne.s32.totalorder %s80, %s96
      %p98 = scmp.eq.s32.totalorder %s23, 0
      %p99 = por %p97, %p98
      %s100 = ssub.s32 %s26, %s35
      %p101 = scmp.eq.s32.totalorder %s100, 0
      %s103 = sadd.s32 %s102, 1
      %s104 = scalar_select %p101, %s102, %s103
      %p107 = pneg %p101
      %p108 = scmp.eq.s32.totalorder %s17, 7
      %p109 = por %p107, %p108
      %p110 = scmp.ne.s32.totalorder %s102, %s105
      %p111 = scmp.eq.s32.totalorder %s17, 0
      %p112 = por %p110, %p111
      %p113 = scmp.ne.s32.totalorder %s102, %s105
      %p114 = scmp.eq.s32.totalorder %s22, 7
      %p115 = por %p113, %p114
      %p116 = scmp.ne.s32.totalorder %s105, %s106
      %p117 = scmp.eq.s32.totalorder %s22, 0
      %p118 = por %p116, %p117
      %p119 = scmp.ne.s32.totalorder %s105, %s106
      %p120 = scmp.eq.s32.totalorder %s23, 7
      %p121 = por %p119, %p120
      %p123 = scmp.ne.s32.totalorder %s106, %s122
      %p124 = scmp.eq.s32.totalorder %s23, 0
      %p125 = por %p123, %p124
      %s126 = ssub.s32 %s26, %s35
      %p127 = scmp.eq.s32.totalorder %s126, 0
      %s129 = sadd.s32 %s128, 1
      %s130 = scalar_select %p127, %s128, %s129
      %p133 = pneg %p127
      %p134 = scmp.eq.s32.totalorder %s17, 7
      %p135 = por %p133, %p134
      %p136 = scmp.ne.s32.totalorder %s128, %s131
      %p137 = scmp.eq.s32.totalorder %s17, 0
      %p138 = por %p136, %p137
      %p139 = scmp.ne.s32.totalorder %s128, %s131
      %p140 = scmp.eq.s32.totalorder %s22, 7
      %p141 = por %p139, %p140
      %p142 = scmp.ne.s32.totalorder %s131, %s132
      %p143 = scmp.eq.s32.totalorder %s22, 0
      %p144 = por %p142, %p143
      %p145 = scmp.ne.s32.totalorder %s131, %s132
      %p146 = scmp.eq.s32.totalorder %s23, 7
      %p147 = por %p145, %p146
      %p149 = scmp.ne.s32.totalorder %s132, %s148
      %p150 = scmp.eq.s32.totalorder %s23, 0
      %p151 = por %p149, %p150
      %s152 = ssub.s32 %s24, %s43
      %s153 = ssub.s32 %s26, %s35
      %s154 = sor.u32 %s152, %s153
      %p155 = scmp.eq.s32.totalorder %s154, 0
      %s157 = sadd.s32 %s156, 1
      %s158 = scalar_select %p155, %s156, %s157
      %p161 = pneg %p155
      %p162 = scmp.eq.s32.totalorder %s17, 7
      %p163 = por %p161, %p162
      %p164 = scmp.ne.s32.totalorder %s156, %s159
      %p165 = scmp.eq.s32.totalorder %s17, 0
      %p166 = por %p164, %p165
      %p167 = scmp.ne.s32.totalorder %s156, %s159
      %p168 = scmp.eq.s32.totalorder %s22, 7
      %p169 = por %p167, %p168
      %p170 = scmp.ne.s32.totalorder %s159, %s160
      %p171 = scmp.eq.s32.totalorder %s22, 0
      %p172 = por %p170, %p171
      %p173 = scmp.ne.s32.totalorder %s159, %s160
      %p174 = scmp.eq.s32.totalorder %s23, 7
      %p175 = por %p173, %p174
      %p177 = scmp.ne.s32.totalorder %s160, %s176
      %p178 = scmp.eq.s32.totalorder %s23, 0
      %p179 = por %p177, %p178
      %s181 = sadd.s32 %s180, 1
      %p184 = scmp.eq.s32.totalorder %s17, 7
      %p185 = scmp.ne.s32.totalorder %s180, %s182
      %p186 = scmp.eq.s32.totalorder %s17, 0
      %p187 = por %p185, %p186
      %p188 = scmp.ne.s32.totalorder %s180, %s182
      %p189 = scmp.eq.s32.totalorder %s22, 7
      %p190 = por %p188, %p189
      %p191 = scmp.ne.s32.totalorder %s182, %s183
      %p192 = scmp.eq.s32.totalorder %s22, 0
      %p193 = por %p191, %p192
      %p194 = scmp.ne.s32.totalorder %s182, %s183
      %p195 = scmp.eq.s32.totalorder %s23, 7
      %p196 = por %p194, %p195
      %p198 = scmp.ne.s32.totalorder %s183, %s197
      %p199 = scmp.eq.s32.totalorder %s23, 0
      %p200 = por %p198, %p199
      %s201 = ssub.s32 %s24, %s43
      %s202 = ssub.s32 %s26, %s35
      %s203 = sor.u32 %s201, %s202
      %s204 = ssub.s32 %s25, %s39
      %s205 = sor.u32 %s203, %s204
      %p206 = scmp.eq.s32.totalorder %s205, 0
      %s208 = sadd.s32 %s207, 1
      %s209 = scalar_select %p206, %s207, %s208
      %p212 = pneg %p206
      %p213 = scmp.eq.s32.totalorder %s17, 7
      %p214 = por %p212, %p213
      %p215 = scmp.ne.s32.totalorder %s207, %s210
      %p216 = scmp.eq.s32.totalorder %s17, 0
      %p217 = por %p215, %p216
      %p218 = scmp.ne.s32.totalorder %s207, %s210
      %p219 = scmp.eq.s32.totalorder %s22, 7
      %p220 = por %p218, %p219
      %p221 = scmp.ne.s32.totalorder %s210, %s211
      %p222 = scmp.eq.s32.totalorder %s22, 0
      %p223 = por %p221, %p222
      %p224 = scmp.ne.s32.totalorder %s210, %s211
      %p225 = scmp.eq.s32.totalorder %s23, 7
      %p226 = por %p224, %p225
      %p228 = scmp.ne.s32.totalorder %s211, %s227
      %p229 = scmp.eq.s32.totalorder %s23, 0
      %p230 = por %p228, %p229
      %s231 = ssub.s32 %s24, %s43
      %s232 = ssub.s32 %s25, %s39
      %s233 = sor.u32 %s231, %s232
      %p234 = scmp.eq.s32.totalorder %s233, 0
      %s236 = sadd.s32 %s235, 1
      %s237 = scalar_select %p234, %s235, %s236
      %p240 = pneg %p234
      %p241 = scmp.eq.s32.totalorder %s17, 7
      %p242 = por %p240, %p241
      %p243 = scmp.ne.s32.totalorder %s235, %s238
      %p244 = scmp.eq.s32.totalorder %s17, 0
      %p245 = por %p243, %p244
      %p246 = scmp.ne.s32.totalorder %s235, %s238
      %p247 = scmp.eq.s32.totalorder %s22, 7
      %p248 = por %p246, %p247
      %p249 = scmp.ne.s32.totalorder %s238, %s239
      %p250 = scmp.eq.s32.totalorder %s22, 0
      %p251 = por %p249, %p250
      %p252 = scmp.ne.s32.totalorder %s238, %s239
      %p253 = scmp.eq.s32.totalorder %s23, 7
      %p254 = por %p252, %p253
      %p256 = scmp.ne.s32.totalorder %s239, %s255
      %p257 = scmp.eq.s32.totalorder %s23, 0
      %p258 = por %p256, %p257
      %p259 = scmp.le.s32.totalorder 1, %s17
      %p260 = scmp.lt.s32.totalorder %s17, 9
      %p261 = pnand %p259, %p260
      %p262 = pneg %p261
      // Predicated region
      $region9: #{cp_mega_voxels_forward.1} parent=5 // pred_check
        _
      $region10: #{cp_mega_voxels_forward.1} parent=5 // pred_check_branch
        %264 = sbr.rel (%p261) target = $region12
      $region11: #{cp_mega_voxels_forward.1} parent=5 // pred_region
        %s265 = ssub.s32 %s17, 1
        // Predicated region
        $region13: #{cp_mega_voxels_forward.1} parent=11 // pred_check
          %p266 = pneg %p193
        $region14: #{cp_mega_voxels_forward.1} parent=11 // pred_check_branch
          %268 = sbr.rel (%p266) target = $region16
        $region15: #{cp_mega_voxels_forward.1} parent=11 // pred_region
          _
        $region16: #{cp_mega_voxels_forward.1} parent=11 // pred_fallthru
          _
      $region12: #{cp_mega_voxels_forward.1} parent=5 // pred_fallthru
        _
      %p269 = scmp.lt.s32.totalorder %s17, 8
      // Predicated region
      $region17: #{cp_mega_voxels_forward.1} parent=5 // pred_check
        %p270 = pneg %p269
      $region18: #{cp_mega_voxels_forward.1} parent=5 // pred_check_branch
        %272 = sbr.rel (%p270) target = $region20
      $region19: #{cp_mega_voxels_forward.1} parent=5 // pred_region
        // Predicated region
        $region21: #{cp_mega_voxels_forward.1} parent=19 // pred_check
          %p273 = pneg %p58
        $region22: #{cp_mega_voxels_forward.1} parent=19 // pred_check_branch
          %275 = sbr.rel (%p273) target = $region24
        $region23: #{cp_mega_voxels_forward.1} parent=19 // pred_region
          %s276 = smul.u32 2, %s25
          %p277 = scmp.lt.s32.totalorder %s24, 1
          %s278 = scalar_select %p277, %s24, 1
          %p279 = scmp.lt.s32.totalorder %s276, 3
          %s280 = scalar_select %p279, %s276, 3
          %s281 = smul.addr %s278, 4
          %s282 = sadd.s32 %s280, %s281
          %s283 = smul.addr %s282, 2
          %s284 = scalar_lea.vmem %s0, %s283
          %s285 = smul.u32 2, %s25
        $region24: #{cp_mega_voxels_forward.1} parent=19 // pred_fallthru
          _
        // Predicated region
        $region25: #{cp_mega_voxels_forward.1} parent=19 // pred_check
          %p286 = pneg %p86
        $region26: #{cp_mega_voxels_forward.1} parent=19 // pred_check_branch
          %288 = sbr.rel (%p286) target = $region28
        $region27: #{cp_mega_voxels_forward.1} parent=19 // pred_region
          %s289 = smul.u32 2, %s25
          %p290 = scmp.lt.s32.totalorder %s24, 1
          %s291 = scalar_select %p290, %s24, 1
          %p292 = scmp.lt.s32.totalorder %s289, 3
          %s293 = scalar_select %p292, %s289, 3
          %s294 = smul.addr %s291, 4
          %s295 = sadd.s32 %s293, %s294
          %s296 = smul.addr %s295, 2
          %s297 = scalar_lea.vmem %s1, %s296
          %s298 = smul.u32 2, %s25
        $region28: #{cp_mega_voxels_forward.1} parent=19 // pred_fallthru
          _
        // Predicated region
        $region29: #{cp_mega_voxels_forward.1} parent=19 // pred_check
          %p299 = pneg %p112
        $region30: #{cp_mega_voxels_forward.1} parent=19 // pred_check_branch
          %301 = sbr.rel (%p299) target = $region32
        $region31: #{cp_mega_voxels_forward.1} parent=19 // pred_region
          %s302 = smul.u32 16, %s26
          %p303 = scmp.lt.s32.totalorder %s302, 31
          %s304 = scalar_select %p303, %s302, 31
          %s305 = smul.addr %s304, 4
          %s306 = scalar_lea.vmem %s2, %s305
          %s307 = smul.u32 16, %s26
        $region32: #{cp_mega_voxels_forward.1} parent=19 // pred_fallthru
          _
        // Predicated region
        $region33: #{cp_mega_voxels_forward.1} parent=19 // pred_check
          %p308 = pneg %p138
        $region34: #{cp_mega_voxels_forward.1} parent=19 // pred_check_branch
          %310 = sbr.rel (%p308) target = $region36
        $region35: #{cp_mega_voxels_forward.1} parent=19 // pred_region
          %s311 = smul.u32 16, %s26
          %p312 = scmp.lt.s32.totalorder %s311, 31
          %s313 = scalar_select %p312, %s311, 31
          %s314 = smul.addr %s313, 8
          %s315 = scalar_lea.vmem %s3, %s314
          %s316 = smul.u32 16, %s26
        $region36: #{cp_mega_voxels_forward.1} parent=19 // pred_fallthru
          _
        // Predicated region
        $region37: #{cp_mega_voxels_forward.1} parent=19 // pred_check
          %p317 = pneg %p166
        $region38: #{cp_mega_voxels_forward.1} parent=19 // pred_check_branch
          %319 = sbr.rel (%p317) target = $region40
        $region39: #{cp_mega_voxels_forward.1} parent=19 // pred_region
          %p320 = scmp.lt.s32.totalorder %s24, 1
          %s321 = scalar_select %p320, %s24, 1
          %p322 = scmp.lt.s32.totalorder %s26, 1
          %s323 = scalar_select %p322, %s26, 1
          %s324 = smul.addr %s321, 2
          %s325 = sadd.s32 %s323, %s324
          %s326 = smul.addr %s325, 2
          %s327 = scalar_lea.vmem %s4, %s326
        $region40: #{cp_mega_voxels_forward.1} parent=19 // pred_fallthru
          _
      $region20: #{cp_mega_voxels_forward.1} parent=5 // pred_fallthru
        _
      %p328 = scmp.le.s32.totalorder 1, %s17
      %p329 = scmp.lt.s32.totalorder %s17, 9
      %p330 = pnand %p328, %p329
      %p331 = pneg %p330
      // Predicated region
      $region41: #{cp_mega_voxels_forward.1} parent=5 // pred_check
        _
      $region42: #{cp_mega_voxels_forward.1} parent=5 // pred_check_branch
        %333 = sbr.rel (%p330) target = $region44
      $region43: #{cp_mega_voxels_forward.1} parent=5 // pred_region
        %s334 = ssub.s32 %s17, 1
        %s335 = smul.u32 2, %s28
        %p336 = scmp.lt.s32.totalorder %s27, 1
        %s337 = scalar_select %p336, %s27, 1
        %p338 = scmp.lt.s32.totalorder %s335, 3
        %s339 = scalar_select %p338, %s335, 3
        %s340 = smul.addr %s337, 4
        %s341 = sadd.s32 %s339, %s340
        %s342 = smul.addr %s341, 2
        %s343 = scalar_lea.vmem %s0, %s342
        %p344 = pneg %p64
        %p345 = pneg %p61
        %s346 = smul.u32 2, %s28
        %p347 = scmp.lt.s32.totalorder %s27, 1
        %s348 = scalar_select %p347, %s27, 1
        %p349 = scmp.lt.s32.totalorder %s346, 3
        %s350 = scalar_select %p349, %s346, 3
        %s351 = smul.addr %s348, 4
        %s352 = sadd.s32 %s350, %s351
        %s353 = smul.addr %s352, 2
        %s354 = scalar_lea.vmem %s1, %s353
        %p355 = pneg %p92
        %p356 = pneg %p89
        %s357 = smul.u32 16, %s29
        %p358 = scmp.lt.s32.totalorder %s357, 31
        %s359 = scalar_select %p358, %s357, 31
        %s360 = smul.addr %s359, 4
        %s361 = scalar_lea.vmem %s2, %s360
        %p362 = pneg %p118
        %p363 = pneg %p115
        %s364 = smul.u32 16, %s29
        %p365 = scmp.lt.s32.totalorder %s364, 31
        %s366 = scalar_select %p365, %s364, 31
        %s367 = smul.addr %s366, 8
        %s368 = scalar_lea.vmem %s3, %s367
        %p369 = pneg %p144
        %p370 = pneg %p141
        %p371 = scmp.lt.s32.totalorder %s27, 1
        %s372 = scalar_select %p371, %s27, 1
        %p373 = scmp.lt.s32.totalorder %s29, 1
        %s374 = scalar_select %p373, %s29, 1
        %s375 = smul.addr %s372, 2
        %s376 = sadd.s32 %s374, %s375
        %s377 = smul.addr %s376, 2
        %s378 = scalar_lea.vmem %s4, %s377
        %p379 = pneg %p172
        %p380 = pneg %p169
        %p381 = pneg %p193
        %p382 = pneg %p190
        %p383 = pneg %p223
        %p384 = pneg %p220
        %s385 = sand.u32 %s210, 1
        %s386 = scalar_lea.sflag [#allocation4], %s385
        %s387 = sand.u32 %s210, 1
        %s388 = smul.addr %s387, 128
        %s389 = scalar_lea.vmem [#allocation3], %s388
        %p390 = pneg %p251
        %p391 = pneg %p248
        %s392 = smul.u32 2, %s28
        %p393 = scmp.lt.s32.totalorder %s27, 1
        %s394 = scalar_select %p393, %s27, 1
        %p395 = scmp.lt.s32.totalorder %s392, 3
        %s396 = scalar_select %p395, %s392, 3
        %s397 = smul.addr %s394, 4
        %s398 = sadd.s32 %s396, %s397
        %s399 = smul.addr %s398, 4
        %s400 = scalar_lea.vmem %s7, %s399
        %s401 = smul.u32 2, %s28
        %p402 = scmp.lt.s32.totalorder %s27, 1
        %s403 = scalar_select %p402, %s27, 1
        %p404 = scmp.lt.s32.totalorder %s401, 3
        %s405 = scalar_select %p404, %s401, 3
        %s406 = smul.addr %s403, 4
        %s407 = sadd.s32 %s405, %s406
        %s408 = smul.addr %s407, 2
        %s409 = scalar_lea.vmem %s0, %s408
        %s410 = smul.u32 2, %s28
        %s411 = smul.u32 2, %s28
        %p412 = scmp.lt.s32.totalorder %s27, 1
        %s413 = scalar_select %p412, %s27, 1
        %p414 = scmp.lt.s32.totalorder %s411, 3
        %s415 = scalar_select %p414, %s411, 3
        %s416 = smul.addr %s413, 4
        %s417 = sadd.s32 %s415, %s416
        %s418 = smul.addr %s417, 2
        %s419 = scalar_lea.vmem %s1, %s418
        %s420 = smul.u32 2, %s28
        %s421 = smul.u32 16, %s29
        %p422 = scmp.lt.s32.totalorder %s421, 31
        %s423 = scalar_select %p422, %s421, 31
        %s424 = smul.addr %s423, 4
        %s425 = scalar_lea.vmem %s2, %s424
        %s426 = smul.u32 16, %s29
        %s427 = smul.u32 16, %s29
        %p428 = scmp.lt.s32.totalorder %s427, 31
        %s429 = scalar_select %p428, %s427, 31
        %s430 = smul.addr %s429, 8
        %s431 = scalar_lea.vmem %s3, %s430
        %s432 = smul.u32 16, %s29
        %p433 = scmp.lt.s32.totalorder %s27, 1
        %s434 = scalar_select %p433, %s27, 1
        %p435 = scmp.lt.s32.totalorder %s29, 1
        %s436 = scalar_select %p435, %s29, 1
        %s437 = smul.addr %s434, 2
        %s438 = sadd.s32 %s436, %s437
        %s439 = smul.addr %s438, 2
        %s440 = scalar_lea.vmem %s4, %s439
        %s441 = smul.u32 16, %s29
        %s442 = smul.u32 2, %s28
        %s443 = smul.u32 2, %s28
        %p444 = scmp.lt.s32.totalorder %s27, 1
        %s445 = scalar_select %p444, %s27, 1
        %p446 = scmp.lt.s32.totalorder %s443, 3
        %s447 = scalar_select %p446, %s443, 3
        %s448 = smul.addr %s445, 4
        %s449 = sadd.s32 %s447, %s448
        %s450 = smul.addr %s449, 4
        %s451 = scalar_lea.vmem %s7, %s450
        %s452 = smul.u32 2, %s28
        %v455 = vld [vmem:[%s409] sm:$0xf]
        %v456 = vld [vmem:[%s425] sm:$0xf]
        %v457 = vld [vmem:[%s425 + $0x4] sm:$0xf]
        %v458 = vld [vmem:[%s425 + $0x8] sm:$0xf]
        %v459 = vld [vmem:[%s425 + $0xc] sm:$0xf]
        %v460 = vld [vmem:[%s425 + $0x10] sm:$0xf]
        %v461 = vld [vmem:[%s425 + $0x14] sm:$0xf]
        %v462 = vld [vmem:[%s425 + $0x18] sm:$0xf]
        %v463 = vld [vmem:[%s425 + $0x1c] sm:$0xf]
        %v464 = vld [vmem:[%s425 + $0x20] sm:$0xf]
        %v465 = vld [vmem:[%s425 + $0x24] sm:$0xf]
        %v466 = vld [vmem:[%s425 + $0x28] sm:$0xf]
        %v467 = vld [vmem:[%s425 + $0x2c] sm:$0xf]
        %v468 = vld [vmem:[%s425 + $0x30] sm:$0xf]
        %v469 = vld [vmem:[%s425 + $0x34] sm:$0xf]
        %v470 = vld [vmem:[%s425 + $0x38] sm:$0xf]
        %v471 = vld [vmem:[%s425 + $0x3c] sm:$0xf]
        %v472 = vld [vmem:[%s431] sm:$0xff]
        %v473 = vld [vmem:[%s431 + $0x8] sm:$0xff]
        %v474 = vld [vmem:[%s431 + $0x10] sm:$0xff]
        %v475 = vld [vmem:[%s431 + $0x18] sm:$0xff]
        %v476 = vld [vmem:[%s431 + $0x20] sm:$0xff]
        %v477 = vld [vmem:[%s431 + $0x28] sm:$0xff]
        %v478 = vld [vmem:[%s431 + $0x30] sm:$0xff]
        %v479 = vld [vmem:[%s431 + $0x38] sm:$0xff]
        %v480 = vld [vmem:[%s431 + $0x40] sm:$0xff]
        %v481 = vld [vmem:[%s431 + $0x48] sm:$0xff]
        %v482 = vld [vmem:[%s431 + $0x50] sm:$0xff]
        %v483 = vld [vmem:[%s431 + $0x58] sm:$0xff]
        %v484 = vld [vmem:[%s431 + $0x60] sm:$0xff]
        %v485 = vld [vmem:[%s431 + $0x68] sm:$0xff]
        %v486 = vld [vmem:[%s431 + $0x70] sm:$0xff]
        %v487 = vld [vmem:[%s431 + $0x78] sm:$0xff]
        %v488 = vld [vmem:[%s440] sm:$0x3]
        %490 = vset.pattern.permute.xlu0 0
        %491 = vperm.xlu0 %490, %v472
        %v492 = vpop.permute.xlu0 %491
        %495 = vset.pattern.permute.xlu0 0
        %496 = vperm.xlu0 %495, %v473
        %v497 = vpop.permute.xlu0 %496
        %500 = vset.pattern.permute.xlu0 0
        %501 = vperm.xlu0 %500, %v474
        %v502 = vpop.permute.xlu0 %501
        %505 = vset.pattern.permute.xlu0 0
        %506 = vperm.xlu0 %505, %v475
        %v507 = vpop.permute.xlu0 %506
        %510 = vset.pattern.permute.xlu0 0
        %511 = vperm.xlu0 %510, %v476
        %v512 = vpop.permute.xlu0 %511
        %515 = vset.pattern.permute.xlu0 0
        %516 = vperm.xlu0 %515, %v477
        %v517 = vpop.permute.xlu0 %516
        %520 = vset.pattern.permute.xlu0 0
        %521 = vperm.xlu0 %520, %v478
        %v522 = vpop.permute.xlu0 %521
        %525 = vset.pattern.permute.xlu0 0
        %526 = vperm.xlu0 %525, %v479
        %v527 = vpop.permute.xlu0 %526
        %530 = vset.pattern.permute.xlu0 0
        %531 = vperm.xlu0 %530, %v480
        %v532 = vpop.permute.xlu0 %531
        %535 = vset.pattern.permute.xlu0 0
        %536 = vperm.xlu0 %535, %v481
        %v537 = vpop.permute.xlu0 %536
        %540 = vset.pattern.permute.xlu0 0
        %541 = vperm.xlu0 %540, %v482
        %v542 = vpop.permute.xlu0 %541
        %545 = vset.pattern.permute.xlu0 0
        %546 = vperm.xlu0 %545, %v483
        %v547 = vpop.permute.xlu0 %546
        %550 = vset.pattern.permute.xlu0 0
        %551 = vperm.xlu0 %550, %v484
        %v552 = vpop.permute.xlu0 %551
        %555 = vset.pattern.permute.xlu0 0
        %556 = vperm.xlu0 %555, %v485
        %v557 = vpop.permute.xlu0 %556
        %560 = vset.pattern.permute.xlu0 0
        %561 = vperm.xlu0 %560, %v486
        %v562 = vpop.permute.xlu0 %561
        %565 = vset.pattern.permute.xlu0 0
        %566 = vperm.xlu0 %565, %v487
        %v567 = vpop.permute.xlu0 %566
        %v585 = vunpack.c.l.b16 %v456
        %v586 = vunpack.c.l.b16 %v457
        %v587 = vunpack.c.l.b16 %v458
        %v588 = vunpack.c.l.b16 %v459
        %v589 = vunpack.c.l.b16 %v460
        %v590 = vunpack.c.l.b16 %v461
        %v591 = vunpack.c.l.b16 %v462
        %v592 = vunpack.c.l.b16 %v463
        %v593 = vunpack.c.l.b16 %v464
        %v594 = vunpack.c.l.b16 %v465
        %v595 = vunpack.c.l.b16 %v466
        %v596 = vunpack.c.l.b16 %v467
        %v597 = vunpack.c.l.b16 %v468
        %v598 = vunpack.c.l.b16 %v469
        %v599 = vunpack.c.l.b16 %v470
        %v600 = vunpack.c.l.b16 %v471
        %v601 = vpack.c.b16 %v586, %v585
        %v602 = vpack.c.b16 %v588, %v587
        %v603 = vpack.c.b16 %v590, %v589
        %v604 = vpack.c.b16 %v592, %v591
        %v605 = vpack.c.b16 %v594, %v593
        %v606 = vpack.c.b16 %v596, %v595
        %v607 = vpack.c.b16 %v598, %v597
        %v608 = vpack.c.b16 %v600, %v599
        %v611 = vunpack.c.l.s4 1983009808
        %v612 = vunpack.c.0.s8 %v611
        %v613 = vlaneseq
        %v614 = vshrl.u32 %v613, 7
        %v615 = vsub.s32 %v612, %v614
        %v616 = vrot.slane %v455, %v615
        %v617 = vcombine.high %v616, %v616
        %vm618 = vcmask 31744
        %v620 = vsel %vm618, %v601, 0
        %v623 = vsel %vm618, %v602, 0
        %v626 = vsel %vm618, %v603, 0
        %v629 = vsel %vm618, %v604, 0
        %v632 = vsel %vm618, %v605, 0
        %v635 = vsel %vm618, %v606, 0
        %v638 = vsel %vm618, %v607, 0
        %v641 = vsel %vm618, %v608, 0
        %vm643 = vcmask 1041408
        %v645 = vsel %vm643, %v616, 0
        %v648 = vsel %vm643, %v617, 0
        %650 = vmatprep.subr.bf16.mxu0 %v648
        %651 = vmatpush1.bf16.msra.mxu0 %v645
        %652 = vmatprep.subr.bf16.mxu0 0
        %653 = vmatpush1.bf16.msra.mxu0 0
        %654 = vmatprep.subr.bf16.mxu0 0
        %655 = vmatpush1.bf16.msra.mxu0 0
        %656 = vmatprep.subr.bf16.mxu0 0
        %657 = vmatpush1.bf16.msra.mxu0 0
        %658 = vmatprep.subr.bf16.mxu0 0
        %659 = vmatpush1.bf16.msra.mxu0 0
        %660 = vmatprep.subr.bf16.mxu0 0
        %661 = vmatpush1.bf16.msra.mxu0 0
        %662 = vmatprep.subr.bf16.mxu0 0
        %663 = vmatpush1.bf16.msra.mxu0 0
        %664 = vmatprep.subr.bf16.mxu0 0
        %665 = vmatpush1.bf16.msra.mxu0 0
        %666 = vmatprep.subr.bf16.mxu0 0
        %667 = vmatpush1.bf16.msra.mxu0 0
        %668 = vmatprep.subr.bf16.mxu0 0
        %669 = vmatpush1.bf16.msra.mxu0 0
        %670 = vmatprep.subr.bf16.mxu0 0
        %671 = vmatpush1.bf16.msra.mxu0 0
        %672 = vmatprep.subr.bf16.mxu0 0
        %673 = vmatpush1.bf16.msra.mxu0 0
        %674 = vmatprep.subr.bf16.mxu0 0
        %675 = vmatpush1.bf16.msra.mxu0 0
        %676 = vmatprep.subr.bf16.mxu0 0
        %677 = vmatpush1.bf16.msra.mxu0 0
        %678 = vmatprep.subr.bf16.mxu0 0
        %679 = vmatpush1.bf16.msra.mxu0 0
        %680 = vmatprep.subr.bf16.mxu0 0
        %681 = vmatpush1.bf16.msra.mxu0 0
        %682 = vmatprep.mubr.bf16.mxu0 0
        %683 = vmatmul.mubr.bf16.gmra.mrb[0].mxu0 %v620
        %v684 = vpop.f32.mrb[0].mxu0
        %v685 = vadd.f32 %v492, %v684
        %v686 = vpop.f32.mrb[0].mxu0
        %v687 = vadd.f32 %v492, %v686
        %v688 = vpop.f32.mrb[0].mxu0
        %v689 = vadd.f32 %v497, %v688
        %v690 = vpop.f32.mrb[0].mxu0
        %v691 = vadd.f32 %v497, %v690
        %692 = vmatprep.mubr.bf16.mxu0 0
        %693 = vmatmul.mubr.bf16.gmra.mrb[0].mxu0 %v623
        %v694 = vpop.f32.mrb[0].mxu0
        %v695 = vadd.f32 %v502, %v694
        %v696 = vpop.f32.mrb[0].mxu0
        %v697 = vadd.f32 %v502, %v696
        %v698 = vpop.f32.mrb[0].mxu0
        %v699 = vadd.f32 %v507, %v698
        %v700 = vpop.f32.mrb[0].mxu0
        %v701 = vadd.f32 %v507, %v700
        %702 = vmatprep.mubr.bf16.mxu0 0
        %703 = vmatmul.mubr.bf16.gmra.mrb[0].mxu0 %v626
        %v704 = vpop.f32.mrb[0].mxu0
        %v705 = vadd.f32 %v512, %v704
        %v706 = vpop.f32.mrb[0].mxu0
        %v707 = vadd.f32 %v512, %v706
        %v708 = vpop.f32.mrb[0].mxu0
        %v709 = vadd.f32 %v517, %v708
        %v710 = vpop.f32.mrb[0].mxu0
        %v711 = vadd.f32 %v517, %v710
        %712 = vmatprep.mubr.bf16.mxu0 0
        %713 = vmatmul.mubr.bf16.gmra.mrb[0].mxu0 %v629
        %v714 = vpop.f32.mrb[0].mxu0
        %v715 = vadd.f32 %v522, %v714
        %v716 = vpop.f32.mrb[0].mxu0
        %v717 = vadd.f32 %v522, %v716
        %v718 = vpop.f32.mrb[0].mxu0
        %v719 = vadd.f32 %v527, %v718
        %v720 = vpop.f32.mrb[0].mxu0
        %v721 = vadd.f32 %v527, %v720
        %722 = vmatprep.mubr.bf16.mxu0 0
        %723 = vmatmul.mubr.bf16.gmra.mrb[0].mxu0 %v632
        %v724 = vpop.f32.mrb[0].mxu0
        %v725 = vadd.f32 %v532, %v724
        %v726 = vpop.f32.mrb[0].mxu0
        %v727 = vadd.f32 %v532, %v726
        %v728 = vpop.f32.mrb[0].mxu0
        %v729 = vadd.f32 %v537, %v728
        %v730 = vpop.f32.mrb[0].mxu0
        %v731 = vadd.f32 %v537, %v730
        %732 = vmatprep.mubr.bf16.mxu0 0
        %733 = vmatmul.mubr.bf16.gmra.mrb[0].mxu0 %v635
        %v734 = vpop.f32.mrb[0].mxu0
        %v735 = vadd.f32 %v542, %v734
        %v736 = vpop.f32.mrb[0].mxu0
        %v737 = vadd.f32 %v542, %v736
        %v738 = vpop.f32.mrb[0].mxu0
        %v739 = vadd.f32 %v547, %v738
        %v740 = vpop.f32.mrb[0].mxu0
        %v741 = vadd.f32 %v547, %v740
        %742 = vmatprep.mubr.bf16.mxu0 0
        %743 = vmatmul.mubr.bf16.gmra.mrb[0].mxu0 %v638
        %v744 = vpop.f32.mrb[0].mxu0
        %v745 = vadd.f32 %v552, %v744
        %v746 = vpop.f32.mrb[0].mxu0
        %v747 = vadd.f32 %v552, %v746
        %v748 = vpop.f32.mrb[0].mxu0
        %v749 = vadd.f32 %v557, %v748
        %v750 = vpop.f32.mrb[0].mxu0
        %v751 = vadd.f32 %v557, %v750
        %752 = vmatprep.mubr.bf16.mxu0 0
        %753 = vmatmul.mubr.bf16.gmra.mrb[0].mxu0 %v641
        %v754 = vpop.f32.mrb[0].mxu0
        %v755 = vadd.f32 %v562, %v754
        %v756 = vpop.f32.mrb[0].mxu0
        %v757 = vadd.f32 %v562, %v756
        %v758 = vpop.f32.mrb[0].mxu0
        %v759 = vadd.f32 %v567, %v758
        %v760 = vpop.f32.mrb[0].mxu0
        %v761 = vadd.f32 %v567, %v760
        %762 = vdwg.mxu0
        %v763 = vpack.c.bf16 %v689, %v685
        %v764 = vpack.c.bf16 %v691, %v687
        %v765 = vpack.c.bf16 %v699, %v695
        %v766 = vpack.c.bf16 %v701, %v697
        %v767 = vpack.c.bf16 %v709, %v705
        %v768 = vpack.c.bf16 %v711, %v707
        %v769 = vpack.c.bf16 %v719, %v715
        %v770 = vpack.c.bf16 %v721, %v717
        %v771 = vpack.c.bf16 %v729, %v725
        %v772 = vpack.c.bf16 %v731, %v727
        %v773 = vpack.c.bf16 %v739, %v735
        %v774 = vpack.c.bf16 %v741, %v737
        %v775 = vpack.c.bf16 %v749, %v745
        %v776 = vpack.c.bf16 %v751, %v747
        %v777 = vpack.c.bf16 %v759, %v755
        %v778 = vpack.c.bf16 %v761, %v757
        %v795 = vunpack.c.l.b16 %v763
        %v796 = vunpack.c.l.b16 %v764
        %v797 = vunpack.c.h.b16 %v763
        %v798 = vunpack.c.h.b16 %v764
        %v799 = vunpack.c.l.b16 %v765
        %v800 = vunpack.c.l.b16 %v766
        %v801 = vunpack.c.h.b16 %v765
        %v802 = vunpack.c.h.b16 %v766
        %v803 = vunpack.c.l.b16 %v767
        %v804 = vunpack.c.l.b16 %v768
        %v805 = vunpack.c.h.b16 %v767
        %v806 = vunpack.c.h.b16 %v768
        %v807 = vunpack.c.l.b16 %v769
        %v808 = vunpack.c.l.b16 %v770
        %v809 = vunpack.c.h.b16 %v769
        %v810 = vunpack.c.h.b16 %v770
        %v811 = vunpack.c.l.b16 %v771
        %v812 = vunpack.c.l.b16 %v772
        %v813 = vunpack.c.h.b16 %v771
        %v814 = vunpack.c.h.b16 %v772
        %v815 = vunpack.c.l.b16 %v773
        %v816 = vunpack.c.l.b16 %v774
        %v817 = vunpack.c.h.b16 %v773
        %v818 = vunpack.c.h.b16 %v774
        %v819 = vunpack.c.l.b16 %v775
        %v820 = vunpack.c.l.b16 %v776
        %v821 = vunpack.c.h.b16 %v775
        %v822 = vunpack.c.h.b16 %v776
        %v823 = vunpack.c.l.b16 %v777
        %v824 = vunpack.c.l.b16 %v778
        %v825 = vunpack.c.h.b16 %v777
        %v826 = vunpack.c.h.b16 %v778
        %v827 = vpack.c.b16 %v796, %v795
        %v828 = vpack.c.b16 %v798, %v797
        %v829 = vpack.c.b16 %v800, %v799
        %v830 = vpack.c.b16 %v802, %v801
        %v831 = vpack.c.b16 %v804, %v803
        %v832 = vpack.c.b16 %v806, %v805
        %v833 = vpack.c.b16 %v808, %v807
        %v834 = vpack.c.b16 %v810, %v809
        %v835 = vpack.c.b16 %v812, %v811
        %v836 = vpack.c.b16 %v814, %v813
        %v837 = vpack.c.b16 %v816, %v815
        %v838 = vpack.c.b16 %v818, %v817
        %v839 = vpack.c.b16 %v820, %v819
        %v840 = vpack.c.b16 %v822, %v821
        %v841 = vpack.c.b16 %v824, %v823
        %v842 = vpack.c.b16 %v826, %v825
        %859 = vst [vmem:[%s389] sm:$0xff] %v827
        %860 = vst [vmem:[%s389 + $0x8] sm:$0xff] %v828
        %861 = vst [vmem:[%s389 + $0x10] sm:$0xff] %v829
        %862 = vst [vmem:[%s389 + $0x18] sm:$0xff] %v830
        %863 = vst [vmem:[%s389 + $0x20] sm:$0xff] %v831
        %864 = vst [vmem:[%s389 + $0x28] sm:$0xff] %v832
        %865 = vst [vmem:[%s389 + $0x30] sm:$0xff] %v833
        %866 = vst [vmem:[%s389 + $0x38] sm:$0xff] %v834
        %867 = vst [vmem:[%s389 + $0x40] sm:$0xff] %v835
        %868 = vst [vmem:[%s389 + $0x48] sm:$0xff] %v836
        %869 = vst [vmem:[%s389 + $0x50] sm:$0xff] %v837
        %870 = vst [vmem:[%s389 + $0x58] sm:$0xff] %v838
        %871 = vst [vmem:[%s389 + $0x60] sm:$0xff] %v839
        %872 = vst [vmem:[%s389 + $0x68] sm:$0xff] %v840
        %873 = vst [vmem:[%s389 + $0x70] sm:$0xff] %v841
        %874 = vst [vmem:[%s389 + $0x78] sm:$0xff] %v842
        %p875 = scmp.eq.s32.totalorder %s29, 0
        // Predicated region
        $region45: #{cp_mega_voxels_forward.1} parent=43 // pred_check
          %p876 = pneg %p875
        $region46: #{cp_mega_voxels_forward.1} parent=43 // pred_check_branch
          %878 = sbr.rel (%p876) target = $region48
        $region47: #{cp_mega_voxels_forward.1} parent=43 // pred_region
          %v879 = vld [vmem:[%s5] sm:$0x3]
          %v880 = vld [vmem:[%s419] sm:$0xf]
          %v883 = vunpack.c.l.s4 1983009808
          %v884 = vunpack.c.0.s8 %v883
          %v885 = vlaneseq
          %v886 = vshrl.u32 %v885, 7
          %v887 = vsub.s32 %v884, %v886
          %v888 = vrot.slane %v880, %v887
          %v889 = vcombine.high %v888, %v888
          %v891 = vsel %vm618, %v879, 0
          %v894 = vsel %vm643, %v888, 0
          %v897 = vsel %vm643, %v889, 0
          %899 = vmatprep.subr.bf16.mxu0 %v897
          %900 = vmatpush1.bf16.msra.mxu0 %v894
          %901 = vmatprep.subr.bf16.mxu0 0
          %902 = vmatpush1.bf16.msra.mxu0 0
          %903 = vmatprep.subr.bf16.mxu0 0
          %904 = vmatpush1.bf16.msra.mxu0 0
          %905 = vmatprep.subr.bf16.mxu0 0
          %906 = vmatpush1.bf16.msra.mxu0 0
          %907 = vmatprep.subr.bf16.mxu0 0
          %908 = vmatpush1.bf16.msra.mxu0 0
          %909 = vmatprep.subr.bf16.mxu0 0
          %910 = vmatpush1.bf16.msra.mxu0 0
          %911 = vmatprep.subr.bf16.mxu0 0
          %912 = vmatpush1.bf16.msra.mxu0 0
          %913 = vmatprep.subr.bf16.mxu0 0
          %914 = vmatpush1.bf16.msra.mxu0 0
          %915 = vmatprep.subr.bf16.mxu0 0
          %916 = vmatpush1.bf16.msra.mxu0 0
          %917 = vmatprep.subr.bf16.mxu0 0
          %918 = vmatpush1.bf16.msra.mxu0 0
          %919 = vmatprep.subr.bf16.mxu0 0
          %920 = vmatpush1.bf16.msra.mxu0 0
          %921 = vmatprep.subr.bf16.mxu0 0
          %922 = vmatpush1.bf16.msra.mxu0 0
          %923 = vmatprep.subr.bf16.mxu0 0
          %924 = vmatpush1.bf16.msra.mxu0 0
          %925 = vmatprep.subr.bf16.mxu0 0
          %926 = vmatpush1.bf16.msra.mxu0 0
          %927 = vmatprep.subr.bf16.mxu0 0
          %928 = vmatpush1.bf16.msra.mxu0 0
          %929 = vmatprep.subr.bf16.mxu0 0
          %930 = vmatpush1.bf16.msra.mxu0 0
          %931 = vmatprep.mubr.bf16.mxu0 0
          %932 = vmatmul.mubr.bf16.gmra.mrb[0].mxu0 %v891
          %v933 = vpop.f32.mrb[0].mxu0
          %v934 = vadd.f32 0.0, %v933
          %v935 = vpop.f32.mrb[0].mxu0
          %v936 = vadd.f32 0.0, %v935
          %v937 = vpop.f32.mrb[0].mxu0
          %v938 = vpop.f32.mrb[0].mxu0
          %939 = vdwg.mxu0
          %v942 = vcombine.low %v934, %v936
          %944 = vst [vmem:[#allocation2] sm:$0xff] %v942
        $region48: #{cp_mega_voxels_forward.1} parent=43 // pred_fallthru
          _
        %v945 = vxor.u32 %v763, 2147516416
        %v946 = vxor.u32 %v764, 2147516416
        %v947 = vxor.u32 %v765, 2147516416
        %v948 = vxor.u32 %v766, 2147516416
        %v949 = vxor.u32 %v767, 2147516416
        %v950 = vxor.u32 %v768, 2147516416
        %v951 = vxor.u32 %v769, 2147516416
        %v952 = vxor.u32 %v770, 2147516416
        %v953 = vxor.u32 %v771, 2147516416
        %v954 = vxor.u32 %v772, 2147516416
        %v955 = vxor.u32 %v773, 2147516416
        %v956 = vxor.u32 %v774, 2147516416
        %v957 = vxor.u32 %v775, 2147516416
        %v958 = vxor.u32 %v776, 2147516416
        %v959 = vxor.u32 %v777, 2147516416
        %v960 = vxor.u32 %v778, 2147516416
        %v962 = vmul.bf16 %v945, 1069105081
        %v963 = vpow.bf16.pop %v962
        %v965 = vmul.bf16 %v946, 1069105081
        %v966 = vpow.bf16.pop %v965
        %v968 = vmul.bf16 %v947, 1069105081
        %v969 = vpow.bf16.pop %v968
        %v971 = vmul.bf16 %v948, 1069105081
        %v972 = vpow.bf16.pop %v971
        %v974 = vmul.bf16 %v949, 1069105081
        %v975 = vpow.bf16.pop %v974
        %v977 = vmul.bf16 %v950, 1069105081
        %v978 = vpow.bf16.pop %v977
        %v980 = vmul.bf16 %v951, 1069105081
        %v981 = vpow.bf16.pop %v980
        %v983 = vmul.bf16 %v952, 1069105081
        %v984 = vpow.bf16.pop %v983
        %v986 = vmul.bf16 %v953, 1069105081
        %v987 = vpow.bf16.pop %v986
        %v989 = vmul.bf16 %v954, 1069105081
        %v990 = vpow.bf16.pop %v989
        %v992 = vmul.bf16 %v955, 1069105081
        %v993 = vpow.bf16.pop %v992
        %v995 = vmul.bf16 %v956, 1069105081
        %v996 = vpow.bf16.pop %v995
        %v998 = vmul.bf16 %v957, 1069105081
        %v999 = vpow.bf16.pop %v998
        %v1001 = vmul.bf16 %v958, 1069105081
        %v1002 = vpow.bf16.pop %v1001
        %v1004 = vmul.bf16 %v959, 1069105081
        %v1005 = vpow.bf16.pop %v1004
        %v1007 = vmul.bf16 %v960, 1069105081
        %v1008 = vpow.bf16.pop %v1007
        %v1009 = vadd.bf16 %v963, 1065369472
        %v1010 = vadd.bf16 %v966, 1065369472
        %v1011 = vadd.bf16 %v969, 1065369472
        %v1012 = vadd.bf16 %v972, 1065369472
        %v1013 = vadd.bf16 %v975, 1065369472
        %v1014 = vadd.bf16 %v978, 1065369472
        %v1015 = vadd.bf16 %v981, 1065369472
        %v1016 = vadd.bf16 %v984, 1065369472
        %v1017 = vadd.bf16 %v987, 1065369472
        %v1018 = vadd.bf16 %v990, 1065369472
        %v1019 = vadd.bf16 %v993, 1065369472
        %v1020 = vadd.bf16 %v996, 1065369472
        %v1021 = vadd.bf16 %v999, 1065369472
        %v1022 = vadd.bf16 %v1002, 1065369472
        %v1023 = vadd.bf16 %v1005, 1065369472
        %v1024 = vadd.bf16 %v1008, 1065369472
        %v1025 = vrcp.bf16.pop %v1009
        %v1026 = vmul.bf16 1065369472, %v1025
        %v1027 = vrcp.bf16.pop %v1010
        %v1028 = vmul.bf16 1065369472, %v1027
        %v1029 = vrcp.bf16.pop %v1011
        %v1030 = vmul.bf16 1065369472, %v1029
        %v1031 = vrcp.bf16.pop %v1012
        %v1032 = vmul.bf16 1065369472, %v1031
        %v1033 = vrcp.bf16.pop %v1013
        %v1034 = vmul.bf16 1065369472, %v1033
        %v1035 = vrcp.bf16.pop %v1014
        %v1036 = vmul.bf16 1065369472, %v1035
        %v1037 = vrcp.bf16.pop %v1015
        %v1038 = vmul.bf16 1065369472, %v1037
        %v1039 = vrcp.bf16.pop %v1016
        %v1040 = vmul.bf16 1065369472, %v1039
        %v1041 = vrcp.bf16.pop %v1017
        %v1042 = vmul.bf16 1065369472, %v1041
        %v1043 = vrcp.bf16.pop %v1018
        %v1044 = vmul.bf16 1065369472, %v1043
        %v1045 = vrcp.bf16.pop %v1019
        %v1046 = vmul.bf16 1065369472, %v1045
        %v1047 = vrcp.bf16.pop %v1020
        %v1048 = vmul.bf16 1065369472, %v1047
        %v1049 = vrcp.bf16.pop %v1021
        %v1050 = vmul.bf16 1065369472, %v1049
        %v1051 = vrcp.bf16.pop %v1022
        %v1052 = vmul.bf16 1065369472, %v1051
        %v1053 = vrcp.bf16.pop %v1023
        %v1054 = vmul.bf16 1065369472, %v1053
        %v1055 = vrcp.bf16.pop %v1024
        %v1056 = vmul.bf16 1065369472, %v1055
        %v1057 = vld [vmem:[#allocation2] sm:$0xff]
        %1058 = vmatprep.subr.bf16.mxu0 %v1028
        %1059 = vmatpush1.bf16.msra.mxu0 %v1026
        %1060 = vmatprep.subr.bf16.mxu0 %v1032
        %1061 = vmatpush1.bf16.msra.mxu0 %v1030
        %1062 = vmatprep.subr.bf16.mxu0 %v1036
        %1063 = vmatpush1.bf16.msra.mxu0 %v1034
        %1064 = vmatprep.subr.bf16.mxu0 %v1040
        %1065 = vmatpush1.bf16.msra.mxu0 %v1038
        %1066 = vmatprep.subr.bf16.mxu0 %v1044
        %1067 = vmatpush1.bf16.msra.mxu0 %v1042
        %1068 = vmatprep.subr.bf16.mxu0 %v1048
        %1069 = vmatpush1.bf16.msra.mxu0 %v1046
        %1070 = vmatprep.subr.bf16.mxu0 %v1052
        %1071 = vmatpush1.bf16.msra.mxu0 %v1050
        %1072 = vmatprep.subr.bf16.mxu0 %v1056
        %1073 = vmatpush1.bf16.msra.mxu0 %v1054
        %1074 = vmatprep.subr.bf16.mxu0 0
        %1075 = vmatpush1.bf16.msra.mxu0 0
        %1076 = vmatprep.subr.bf16.mxu0 0
        %1077 = vmatpush1.bf16.msra.mxu0 0
        %1078 = vmatprep.subr.bf16.mxu0 0
        %1079 = vmatpush1.bf16.msra.mxu0 0
        %1080 = vmatprep.subr.bf16.mxu0 0
        %1081 = vmatpush1.bf16.msra.mxu0 0
        %1082 = vmatprep.subr.bf16.mxu0 0
        %1083 = vmatpush1.bf16.msra.mxu0 0
        %1084 = vmatprep.subr.bf16.mxu0 0
        %1085 = vmatpush1.bf16.msra.mxu0 0
        %1086 = vmatprep.subr.bf16.mxu0 0
        %1087 = vmatpush1.bf16.msra.mxu0 0
        %1088 = vmatprep.subr.bf16.mxu0 0
        %1089 = vmatpush1.bf16.msra.mxu0 0
        %1090 = vmatprep.mubr.bf16.mxu0 0
        %1091 = vmatmul.mubr.bf16.gmra.mrb[0].mxu0 %v488
        %v1092 = vpop.f32.mrb[0].mxu0
        %v1093 = vadd.f32 0.0, %v1092
        %v1094 = vpop.f32.mrb[0].mxu0
        %v1095 = vadd.f32 0.0, %v1094
        %v1096 = vpop.f32.mrb[0].mxu0
        %v1097 = vpop.f32.mrb[0].mxu0
        %1098 = vdwg.mxu0
        %v1101 = vcombine.low %v1093, %v1095
        %v1103 = vadd.f32 %v1057, %v1101
        %1104 = vst [vmem:[#allocation2] sm:$0xff] %v1103
        %p1105 = scmp.eq.s32.totalorder %s29, 1
        // Predicated region
        $region49: #{cp_mega_voxels_forward.1} parent=43 // pred_check
          %p1106 = pneg %p1105
        $region50: #{cp_mega_voxels_forward.1} parent=43 // pred_check_branch
          %1108 = sbr.rel (%p1106) target = $region52
        $region51: #{cp_mega_voxels_forward.1} parent=43 // pred_region
          %v1109 = vld [vmem:[#allocation2] sm:$0xff]
          %1110 = vst [vmem:[%s451] sm:$0xff] %v1109
        $region52: #{cp_mega_voxels_forward.1} parent=43 // pred_fallthru
          _
        %s1111 = sand.u32 %s210, 1
        %s1112 = scalar_lea.sflag [#allocation4], %s1111
        %s1113 = sand.u32 %s210, 1
        %s1114 = smul.addr %s1113, 128
        %s1115 = scalar_lea.vmem [#allocation3], %s1114
        %s1116 = smul.u32 2, %s28
        %p1117 = scmp.lt.s32.totalorder %s27, 1
        %s1118 = scalar_select %p1117, %s27, 1
        %p1119 = scmp.lt.s32.totalorder %s1116, 3
        %s1120 = scalar_select %p1119, %s1116, 3
        %s1121 = smul.addr %s1118, 4
        %s1122 = sadd.s32 %s1120, %s1121
        %s1123 = smul.addr %s1122, 4
        %s1124 = scalar_lea.vmem %s7, %s1123
        // Predicated region
        $region53: #{cp_mega_voxels_forward.1} parent=43 // pred_check
          %p1125 = pneg %p220
        $region54: #{cp_mega_voxels_forward.1} parent=43 // pred_check_branch
          %1127 = sbr.rel (%p1125) target = $region56
        $region55: #{cp_mega_voxels_forward.1} parent=43 // pred_region
          %s1128 = smul.u32 16, %s29
          %s1129 = smul.u32 2, %s28
          %s1131 = ssub.s32 2048, 2048
          %1132 = vsyncadd %s1112, %s1131
          %s1133 = smul.addr %s1128, 4
          %s1134 = sadd.s32 %s1129, %s1133
          %s1135 = smul.addr %s27, 128
          %s1136 = sadd.s32 %s1134, %s1135
          %s1137 = smul.addr %s1136, 64
          %s1138 = scalar_lea.hbm %s6, %s1137
          %s1139 = sshll.u32 %s1115, 4
          %s1140 = int_to_ptr.vmem [resolvable:$true] %s1139
          %1145 = dma.vmem_to_hbm [thread:$0]  %s1140, 2048, %s1138, %s1112, 128, 256, 8
        $region56: #{cp_mega_voxels_forward.1} parent=43 // pred_fallthru
          _
        // Predicated region
        $region57: #{cp_mega_voxels_forward.1} parent=43 // pred_check
          %p1146 = pneg %p248
        $region58: #{cp_mega_voxels_forward.1} parent=43 // pred_check_branch
          %1148 = sbr.rel (%p1146) target = $region60
        $region59: #{cp_mega_voxels_forward.1} parent=43 // pred_region
          %s1149 = smul.u32 2, %s28
        $region60: #{cp_mega_voxels_forward.1} parent=43 // pred_fallthru
          _
      $region44: #{cp_mega_voxels_forward.1} parent=5 // pred_fallthru
        _
      %p1150 = scmp.le.s32.totalorder 2, %s17
      // Predicated region
      $region61: #{cp_mega_voxels_forward.1} parent=5 // pred_check
        %p1151 = pneg %p1150
      $region62: #{cp_mega_voxels_forward.1} parent=5 // pred_check_branch
        %1153 = sbr.rel (%p1151) target = $region64
      $region63: #{cp_mega_voxels_forward.1} parent=5 // pred_region
        %s1154 = ssub.s32 %s17, 2
        // Predicated region
        $region65: #{cp_mega_voxels_forward.1} parent=63 // pred_check
          %p1155 = pneg %p226
        $region66: #{cp_mega_voxels_forward.1} parent=63 // pred_check_branch
          %1157 = sbr.rel (%p1155) target = $region68
        $region67: #{cp_mega_voxels_forward.1} parent=63 // pred_region
          %s1158 = sand.u32 %s211, 1
          %s1159 = scalar_lea.sflag [#allocation4], %s1158
          %s1160 = sand.u32 %s211, 1
          %s1161 = smul.addr %s1160, 128
          %s1162 = scalar_lea.vmem [#allocation3], %s1161
          %1163 = dma.done %s1159, 2048
        $region68: #{cp_mega_voxels_forward.1} parent=63 // pred_fallthru
          _
        // Predicated region
        $region69: #{cp_mega_voxels_forward.1} parent=63 // pred_check
          %p1164 = pneg %p254
        $region70: #{cp_mega_voxels_forward.1} parent=63 // pred_check_branch
          %1166 = sbr.rel (%p1164) target = $region72
        $region71: #{cp_mega_voxels_forward.1} parent=63 // pred_region
          %s1167 = smul.u32 2, %s31
          %p1168 = scmp.lt.s32.totalorder %s30, 1
          %s1169 = scalar_select %p1168, %s30, 1
          %p1170 = scmp.lt.s32.totalorder %s1167, 3
          %s1171 = scalar_select %p1170, %s1167, 3
          %s1172 = smul.addr %s1169, 4
          %s1173 = sadd.s32 %s1171, %s1172
          %s1174 = smul.addr %s1173, 4
          %s1175 = scalar_lea.vmem %s7, %s1174
        $region72: #{cp_mega_voxels_forward.1} parent=63 // pred_fallthru
          _
      $region64: #{cp_mega_voxels_forward.1} parent=5 // pred_fallthru
        _
    $region6: #{cp_mega_voxels_forward.1} parent=1 // loop_footer
      %s21 = sadd.s32 1, %s17
    $region7: #{cp_mega_voxels_forward.1} parent=1 // loop_footer_branch
      %16 = sbr.rel target = $region3
    $region8: #{cp_mega_voxels_forward.1} parent=1 // loop_exit
      _
    %1176 = vsyncpa [#allocation4], 1
    %s1177 = scalar_lea.sflag [#allocation4], 1
    %1178 = vsyncpa %s1177, 1

</llo_original>
